<compile_context>
chip_gen: v7x
topology: tpu7x:2x2x1
jax: 0.10.0
libtpu: 0.0.40
codegen_flags: <defaults>
</compile_context>

<pallas_src>
import math

import jax
import jax.numpy as jnp
from jax import lax
from jax.experimental import pallas as pl
from jax.experimental.pallas import tpu as pltpu


# ----------------------------- kernels ------------------------------------ #

def _linear_kernel(x_ref, w_ref, b_ref, o_ref):
    # x_ref: (tm, K)  w_ref: (Np, K)  b_ref: (1, Np)  o_ref: (tm, Np)
    # Contract over the K (last) axis of both operands -> no transpose needed.
    y = lax.dot_general(
        x_ref[...], w_ref[...],
        dimension_numbers=(((1,), (1,)), ((), ())),
        preferred_element_type=jnp.float32)
    o_ref[...] = (y + b_ref[...]).astype(o_ref.dtype)


def _reparam_kernel(mu_ref, rho_ref, eps_ref, out_ref):
    # Numerically stable softplus: log1p(exp(x)) = max(x,0) + log1p(exp(-|x|)).
    rho = rho_ref[...]
    sigma = jnp.maximum(rho, 0.0) + jnp.log1p(jnp.exp(-jnp.abs(rho)))
    out_ref[...] = (mu_ref[...] + sigma * eps_ref[...]).astype(out_ref.dtype)


# ----------------------------- helpers ------------------------------------ #

def _round_up(v, m):
    return ((v + m - 1) // m) * m


def _reparameterize(mu, rho, eps):
    """One-shot elementwise Pallas kernel: mu + softplus(rho) * eps."""
    return pl.pallas_call(
        _reparam_kernel,
        out_shape=jax.ShapeDtypeStruct(mu.shape, jnp.float32),
    )(mu, rho, eps)


# ----------------------------- wrapper ------------------------------------ #

def bayesian_layer_3d(x, params, *, sample=False, eps=None, tm_max=256,
                      compute_dtype=jnp.float32):
    """Forward pass of BayesianLayer3D.

    x:      (..., in_features) float32
    params: dict with w_mu (N,K), w_rho (N,K), b_mu (N,), b_rho (N,)
    sample: if True, uses reparameterization-trick weights (eps required).
    compute_dtype: dtype fed to the MXU (f32 accumulation always); use
                   jnp.bfloat16 on v6e/v7x for ~2x matmul throughput.
    """
    w_mu, w_rho = params["w_mu"], params["w_rho"]
    b_mu, b_rho = params["b_mu"], params["b_rho"]
    N, K = w_mu.shape

    # --- effective weights (sampling hoisted out of the matmul grid) ---
    if sample:
        assert eps is not None, "sample=True requires eps=(w_eps, b_eps)"
        w_eps, b_eps = eps
        w_eff = _reparameterize(w_mu, w_rho, w_eps)
        b_eff = _reparameterize(b_mu.reshape(1, N), b_rho.reshape(1, N),
                                b_eps.reshape(1, N))
    else:
        w_eff = w_mu
        b_eff = b_mu.reshape(1, N)

    # --- flatten leading dims and pick a row tile ---
    lead_shape = x.shape[:-1]
    M = int(math.prod(lead_shape)) if lead_shape else 1
    x2d = x.reshape(M, K)

    tm = min(tm_max, _round_up(M, 8))      # >=8 sublanes; big tile when M allows
    Mp = _round_up(M, tm)                  # pad M instead of asserting divisibility
    Np = _round_up(N, 128)                 # lane-dense output (unmasked stores)

    if Mp != M:
        x2d = jnp.pad(x2d, ((0, Mp - M), (0, 0)))
    if Np != N:
        w_eff = jnp.pad(w_eff, ((0, Np - N), (0, 0)))
        b_eff = jnp.pad(b_eff, ((0, 0), (0, Np - N)))

    if compute_dtype != jnp.float32:
        x2d = x2d.astype(compute_dtype)
        w_eff = w_eff.astype(compute_dtype)
    b_eff = b_eff.astype(jnp.float32)

    grid = (Mp // tm,)
    x_spec = pl.BlockSpec((tm, K), lambda i: (i, 0))
    w_spec = pl.BlockSpec((Np, K), lambda i: (0, 0))
    b_spec = pl.BlockSpec((1, Np), lambda i: (0, 0))
    o_spec = pl.BlockSpec((tm, Np), lambda i: (i, 0))

    out2d = pl.pallas_call(
        _linear_kernel,
        out_shape=jax.ShapeDtypeStruct((Mp, Np), jnp.float32),
        grid=grid,
        in_specs=[x_spec, w_spec, b_spec],
        out_specs=o_spec,
        compiler_params=pltpu.CompilerParams(
            dimension_semantics=("parallel",),
            vmem_limit_bytes=64 * 1024 * 1024),
    )(x2d, w_eff, b_eff)

    return out2d[:M, :N].reshape(*lead_shape, N)


# ------------------------- parameter init (deterministic) ------------------ #

def init_params(key, in_features, out_features):
    # kaiming_normal_ on (out, in): std = sqrt(2 / fan_in), fan_in = in_features
    std = (2.0 / in_features) ** 0.5
    w_mu = std * jax.random.normal(key, (out_features, in_features), jnp.float32)
    w_rho = jnp.full((out_features, in_features), -3.0, jnp.float32)
    b_mu = jnp.zeros((out_features,), jnp.float32)
    b_rho = jnp.full((out_features,), -3.0, jnp.float32)
    return {"w_mu": w_mu, "w_rho": w_rho, "b_mu": b_mu, "b_rho": b_rho}


# ------------------------------- main -------------------------------------- #

if __name__ == "__main__":
    key = jax.random.PRNGKey(0)
    k_x, k_p, k_we, k_be, k_x2 = jax.random.split(key, 5)

    batch, seq, in_features, out_features = 2, 8, 32, 64
    x = jax.random.normal(k_x, (batch, seq, in_features), jnp.float32)
    params = init_params(k_p, in_features, out_features)

    # ---- eval path (deterministic weights, dropout = identity) ----
    y_eval = jax.block_until_ready(bayesian_layer_3d(x, params, sample=False))
    y_ref = x.reshape(-1, in_features) @ params["w_mu"].T + params["b_mu"]
    y_ref = y_ref.reshape(batch, seq, out_features)
    assert jnp.allclose(y_eval, y_ref, atol=1e-5, rtol=1e-5)

    # ---- sampled path (reparameterization trick, hoisted) ----
    w_eps = jax.random.normal(k_we, (out_features, in_features), jnp.float32)
    b_eps = jax.random.normal(k_be, (out_features,), jnp.float32)
    y_samp = jax.block_until_ready(
        bayesian_layer_3d(x, params, sample=True, eps=(w_eps, b_eps)))
    w_s = params["w_mu"] + jnp.log1p(jnp.exp(params["w_rho"])) * w_eps
    b_s = params["b_mu"] + jnp.log1p(jnp.exp(params["b_rho"])) * b_eps
    y_samp_ref = (x.reshape(-1, in_features) @ w_s.T + b_s).reshape(
        batch, seq, out_features)
    assert jnp.allclose(y_samp, y_samp_ref, atol=1e-5, rtol=1e-5)

    # ---- ragged M (non-divisible leading dims, exercises the padding path) ----
    x_odd = jax.random.normal(k_x2, (3, 5, in_features), jnp.float32)
    y_odd = jax.block_until_ready(bayesian_layer_3d(x_odd, params, sample=False))
    y_odd_ref = (x_odd.reshape(-1, in_features) @ params["w_mu"].T
                 + params["b_mu"]).reshape(3, 5, out_features)
    assert jnp.allclose(y_odd, y_odd_ref, atol=1e-5, rtol=1e-5)

    # ---- bf16 MXU inputs with f32 accumulation (looser tolerance) ----
    y_bf16 = jax.block_until_ready(
        bayesian_layer_3d(x, params, sample=False, compute_dtype=jnp.bfloat16))
    assert jnp.allclose(y_bf16, y_ref, atol=5e-2, rtol=5e-2)

    print("KERNEL_OK")
</pallas_src>

<mosaic_0001>
module attributes {stable_mosaic.version = 11 : i64} {
  func.func @_linear_kernel(%arg0: i32, %arg1: memref<16x32xf32, #tpu.memory_space<vmem>>, %arg2: memref<128x32xf32, #tpu.memory_space<vmem>>, %arg3: memref<1x128xf32, #tpu.memory_space<vmem>>, %arg4: memref<16x128xf32, #tpu.memory_space<vmem>>) attributes {dimension_semantics = [#tpu.dimension_semantics<parallel>], iteration_bounds = array<i64: 1>, scalar_prefetch = 0 : i64, scratch_operands = 0 : i64, tpu.core_type = #tpu.core_type<tc>, window_params = [{transform_indices = @transform_0, window_bounds = array<i64: 16, 32>}, {pipeline_mode = #tpu.pipeline_mode<synchronous>, transform_indices = @transform_1, window_bounds = array<i64: 128, 32>}, {pipeline_mode = #tpu.pipeline_mode<synchronous>, transform_indices = @transform_2, window_bounds = array<i64: 1, 128>}, {transform_indices = @transform_3, window_bounds = array<i64: 16, 128>}]} {
    %c0 = arith.constant 0 : index
    %c0_0 = arith.constant 0 : index
    %0 = vector.load %arg1[%c0, %c0_0] : memref<16x32xf32, #tpu.memory_space<vmem>>, vector<16x32xf32>
    %c0_1 = arith.constant 0 : index
    %c0_2 = arith.constant 0 : index
    %1 = vector.load %arg2[%c0_1, %c0_2] : memref<128x32xf32, #tpu.memory_space<vmem>>, vector<128x32xf32>
    %cst = arith.constant dense<0.000000e+00> : vector<16x128xf32>
    %2 = tpu.matmul %0, %1, %cst {dimension_numbers = #tpu.dot_dimension_numbers<[1], [1], [0], [0], [0, 0, 1, 0], [], []>} : vector<16x32xf32>, vector<128x32xf32>, vector<16x128xf32> -> vector<16x128xf32>
    %c0_3 = arith.constant 0 : index
    %c0_4 = arith.constant 0 : index
    %3 = vector.load %arg3[%c0_3, %c0_4] : memref<1x128xf32, #tpu.memory_space<vmem>>, vector<1x128xf32>
    %4 = vector.broadcast %3 : vector<1x128xf32> to vector<16x128xf32>
    %5 = arith.addf %2, %4 : vector<16x128xf32>
    %c0_5 = arith.constant 0 : index
    %c0_6 = arith.constant 0 : index
    %6 = vector.load %arg4[%c0_5, %c0_6] : memref<16x128xf32, #tpu.memory_space<vmem>>, vector<16x128xf32>
    tpu.vector_store %arg4[%c0_5, %c0_6], %5 {strides = array<i32>} : memref<16x128xf32, #tpu.memory_space<vmem>>, vector<16x128xf32>,
    return
  }
  func.func @transform_0(%arg0: i32) -> (i32, i32) {
    %c0_i32 = arith.constant 0 : i32
    %c0_i32_0 = arith.constant 0 : i32
    return %arg0, %c0_i32 : i32, i32
  }
  func.func @transform_1(%arg0: i32) -> (i32, i32) {
    %c0_i32 = arith.constant 0 : i32
    %c0_i32_0 = arith.constant 0 : i32
    %c0_i32_1 = arith.constant 0 : i32
    return %c0_i32, %c0_i32_0 : i32, i32
  }
  func.func @transform_2(%arg0: i32) -> (i32, i32) {
    %c0_i32 = arith.constant 0 : i32
    %c0_i32_0 = arith.constant 0 : i32
    %c0_i32_1 = arith.constant 0 : i32
    return %c0_i32, %c0_i32_0 : i32, i32
  }
  func.func @transform_3(%arg0: i32) -> (i32, i32) {
    %c0_i32 = arith.constant 0 : i32
    %c0_i32_0 = arith.constant 0 : i32
    return %arg0, %c0_i32 : i32, i32
  }
}

</mosaic_0001>

<llo_original>
// kernel: tpu_custom_call.1
$region0: #{tpu_custom_call.1}
  #allocation0 [shape = 'u32[]', space=smem, size = 0x4, offset = 0x4, fixed_abs, tag = 'smem constant byte address 0x4 - core index']
  #allocation1 [shape = 'u32[144,128]{1,0:T(1,128)}', space=vmem, size = 0x12000, scoped, tag = 'internal scratch']
  %s0 = inlined_call_operand.hbm [shape: f32[16,32], index: 0, kind: input, shape index: {}]
  %s1 = inlined_call_operand.hbm [shape: f32[128,32], index: 1, kind: input, shape index: {}]
  %s2 = inlined_call_operand.hbm [shape: f32[1,128], index: 2, kind: input, shape index: {}]
  %s3 = inlined_call_operand.hbm [shape: f32[16,128], index: 3, kind: output, shape index: {}]
  %s4 = sld [smem:[#allocation0]]
  $region34: #{tpu_custom_call.1} parent=0
    _
  %s6 = ssub.s32 1, %s4
  %s7 = scalar_select 0, %s6, %s4
  $region1: #{tpu_custom_call.1} parent=0
    #allocation2 [shape = 'u8[8192]{0}', space=vmem, size = 0x2000, scoped, tag = 'input window, operand 0, single buffered']
    #allocation3 [shape = 's32[1]{0}', space=sflag, size = 0x4, scoped, tag = 'scoped memory for tpu_custom_call.1']
    #allocation4 [shape = 's32[1]{0}', space=sflag, size = 0x4, scoped, tag = 'scoped memory for tpu_custom_call.1']
    #allocation5 [shape = 'u8[65536]{0}', space=vmem, size = 0x10000, scoped, tag = 'input window, operand 1, single buffered']
    #allocation6 [shape = 's32[1]{0}', space=sflag, size = 0x4, scoped, tag = 'scoped memory for tpu_custom_call.1']
    #allocation7 [shape = 'u8[512]{0}', space=vmem, size = 0x400, scoped, tag = 'input window, operand 2, single buffered']
    #allocation8 [shape = 'u8[8192]{0}', space=vmem, size = 0x2000, scoped, tag = 'output window, operand 0, single buffered']
    %8 = vsyncpa [#allocation3], 0
    %9 = vsyncpa [#allocation6], 0
    %10 = vsyncpa [#allocation4], 0
    // Predicated region
    $region2: #{tpu_custom_call.1} parent=1 // pred_check
      _
    $region3: #{tpu_custom_call.1} parent=1 // pred_check_branch
      %12 = sbr.rel (0) target = $region5
    $region4: #{tpu_custom_call.1} parent=1 // pred_region
      %s14 = ssub.s32 256, 256
      %15 = vsyncadd [#allocation3], %s14
      %s16 = sshll.u32 [#allocation2], 4
      %s17 = int_to_ptr.vmem [resolvable:$true] %s16
      %22 = dma.hbm_to_vmem [thread:$0]  %s0, 256, %s17, [#allocation3], 128, 128, 8
    $region5: #{tpu_custom_call.1} parent=1 // pred_fallthru
      _
    // Predicated region
    $region6: #{tpu_custom_call.1} parent=1 // pred_check
      _
    $region7: #{tpu_custom_call.1} parent=1 // pred_check_branch
      %24 = sbr.rel (0) target = $region9
    $region8: #{tpu_custom_call.1} parent=1 // pred_region
      %s26 = ssub.s32 2048, 2048
      %27 = vsyncadd [#allocation6], %s26
      %s28 = sshll.u32 [#allocation5], 4
      %s29 = int_to_ptr.vmem [resolvable:$true] %s28
      %34 = dma.hbm_to_vmem [thread:$0]  %s1, 2048, %s29, [#allocation6], 128, 128, 8
    $region9: #{tpu_custom_call.1} parent=1 // pred_fallthru
      _
    // Predicated region
    $region10: #{tpu_custom_call.1} parent=1 // pred_check
      _
    $region11: #{tpu_custom_call.1} parent=1 // pred_check_branch
      %36 = sbr.rel (0) target = $region13
    $region12: #{tpu_custom_call.1} parent=1 // pred_region
      %s38 = ssub.s32 16, 16
      %39 = vsyncadd [#allocation6], %s38
      %s41 = sshll.u32 [#allocation7], 4
      %s42 = int_to_ptr.vmem [resolvable:$true] %s41
      %44 = dma.hbm_to_vmem [thread:$0]  %s2, 16, %s42, [#allocation6]
    $region13: #{tpu_custom_call.1} parent=1 // pred_fallthru
      _
    // Predicated region
    $region14: #{tpu_custom_call.1} parent=1 // pred_check
      _
    $region15: #{tpu_custom_call.1} parent=1 // pred_check_branch
      %46 = sbr.rel (0) target = $region17
    $region16: #{tpu_custom_call.1} parent=1 // pred_region
      %47 = dma.done [#allocation3], 256
    $region17: #{tpu_custom_call.1} parent=1 // pred_fallthru
      _
    // Predicated region
    $region18: #{tpu_custom_call.1} parent=1 // pred_check
      _
    $region19: #{tpu_custom_call.1} parent=1 // pred_check_branch
      %49 = sbr.rel (0) target = $region21
    $region20: #{tpu_custom_call.1} parent=1 // pred_region
      %50 = dma.done [#allocation6], 2048
    $region21: #{tpu_custom_call.1} parent=1 // pred_fallthru
      _
    // Predicated region
    $region22: #{tpu_custom_call.1} parent=1 // pred_check
      _
    $region23: #{tpu_custom_call.1} parent=1 // pred_check_branch
      %52 = sbr.rel (0) target = $region25
    $region24: #{tpu_custom_call.1} parent=1 // pred_region
      %53 = dma.done [#allocation6], 16
    $region25: #{tpu_custom_call.1} parent=1 // pred_fallthru
      _
    %v54 = vld [vmem:[#allocation2] sm:$0xff]
    %v55 = vld [vmem:[#allocation2 + $0x8] sm:$0xff]
    %v56 = vld [vmem:[#allocation5] sm:$0xff]
    %v57 = vld [vmem:[#allocation5 + $0x8] sm:$0xff]
    %v58 = vld [vmem:[#allocation5 + $0x10] sm:$0xff]
    %v59 = vld [vmem:[#allocation5 + $0x18] sm:$0xff]
    %v60 = vld [vmem:[#allocation5 + $0x20] sm:$0xff]
    %v61 = vld [vmem:[#allocation5 + $0x28] sm:$0xff]
    %v62 = vld [vmem:[#allocation5 + $0x30] sm:$0xff]
    %v63 = vld [vmem:[#allocation5 + $0x38] sm:$0xff]
    %v64 = vld [vmem:[#allocation5 + $0x40] sm:$0xff]
    %v65 = vld [vmem:[#allocation5 + $0x48] sm:$0xff]
    %v66 = vld [vmem:[#allocation5 + $0x50] sm:$0xff]
    %v67 = vld [vmem:[#allocation5 + $0x58] sm:$0xff]
    %v68 = vld [vmem:[#allocation5 + $0x60] sm:$0xff]
    %v69 = vld [vmem:[#allocation5 + $0x68] sm:$0xff]
    %v70 = vld [vmem:[#allocation5 + $0x70] sm:$0xff]
    %v71 = vld [vmem:[#allocation5 + $0x78] sm:$0xff]
    %v72 = vld [vmem:[#allocation7] sm:$0x1]
    %v74 = vlaneseq
    %v75 = vshrl.u32 %v74, 7
    %v76 = vsub.s32 0, %v75
    %v77 = vrot.slane %v72, %v76
    %vm79 = vcmask 261120
    %v81 = vsel %vm79, %v54, 0
    %v84 = vsel %vm79, %v55, 0
    %v87 = vsel %vm79, %v56, 0
    %v90 = vsel %vm79, %v57, 0
    %v93 = vsel %vm79, %v58, 0
    %v96 = vsel %vm79, %v59, 0
    %v99 = vsel %vm79, %v60, 0
    %v102 = vsel %vm79, %v61, 0
    %v105 = vsel %vm79, %v62, 0
    %v108 = vsel %vm79, %v63, 0
    %v111 = vsel %vm79, %v64, 0
    %v114 = vsel %vm79, %v65, 0
    %v117 = vsel %vm79, %v66, 0
    %v120 = vsel %vm79, %v67, 0
    %v123 = vsel %vm79, %v68, 0
    %v126 = vsel %vm79, %v69, 0
    %v129 = vsel %vm79, %v70, 0
    %v132 = vsel %vm79, %v71, 0
    %134 = vmatprep.subr.mxu0 0.0
    %135 = vmatpush1.xpose.msra.mxu0 %v87
    %136 = vmatprep.subr.mxu0 0.0
    %137 = vmatpush1.xpose.msra.mxu0 %v90
    %138 = vmatprep.subr.mxu0 0.0
    %139 = vmatpush1.xpose.msra.mxu0 %v93
    %140 = vmatprep.subr.mxu0 0.0
    %141 = vmatpush1.xpose.msra.mxu0 %v96
    %142 = vmatprep.subr.mxu0 0.0
    %143 = vmatpush1.xpose.msra.mxu0 %v99
    %144 = vmatprep.subr.mxu0 0.0
    %145 = vmatpush1.xpose.msra.mxu0 %v102
    %146 = vmatprep.subr.mxu0 0.0
    %147 = vmatpush1.xpose.msra.mxu0 %v105
    %148 = vmatprep.subr.mxu0 0.0
    %149 = vmatpush1.xpose.msra.mxu0 %v108
    %150 = vmatprep.subr.mxu0 0.0
    %151 = vmatpush1.xpose.msra.mxu0 %v111
    %152 = vmatprep.subr.mxu0 0.0
    %153 = vmatpush1.xpose.msra.mxu0 %v114
    %154 = vmatprep.subr.mxu0 0.0
    %155 = vmatpush1.xpose.msra.mxu0 %v117
    %156 = vmatprep.subr.mxu0 0.0
    %157 = vmatpush1.xpose.msra.mxu0 %v120
    %158 = vmatprep.subr.mxu0 0.0
    %159 = vmatpush1.xpose.msra.mxu0 %v123
    %160 = vmatprep.subr.mxu0 0.0
    %161 = vmatpush1.xpose.msra.mxu0 %v126
    %162 = vmatprep.subr.mxu0 0.0
    %163 = vmatpush1.xpose.msra.mxu0 %v129
    %164 = vmatprep.subr.mxu0 0.0
    %165 = vmatpush1.xpose.msra.mxu0 %v132
    %166 = vmatprep.subr.mxu0 0.0
    %167 = vmatpush1.xpose.msra.mxu0 0.0
    %168 = vmatprep.subr.mxu0 0.0
    %169 = vmatpush1.xpose.msra.mxu0 0.0
    %170 = vmatprep.subr.mxu0 0.0
    %171 = vmatpush1.xpose.msra.mxu0 0.0
    %172 = vmatprep.subr.mxu0 0.0
    %173 = vmatpush1.xpose.msra.mxu0 0.0
    %174 = vmatprep.subr.mxu0 0.0
    %175 = vmatpush1.xpose.msra.mxu0 0.0
    %176 = vmatprep.subr.mxu0 0.0
    %177 = vmatpush1.xpose.msra.mxu0 0.0
    %178 = vmatprep.subr.mxu0 0.0
    %179 = vmatpush1.xpose.msra.mxu0 0.0
    %180 = vmatprep.subr.mxu0 0.0
    %181 = vmatpush1.xpose.msra.mxu0 0.0
    %182 = vmatprep.subr.mxu0 0.0
    %183 = vmatpush1.xpose.msra.mxu0 0.0
    %184 = vmatprep.subr.mxu0 0.0
    %185 = vmatpush1.xpose.msra.mxu0 0.0
    %186 = vmatprep.subr.mxu0 0.0
    %187 = vmatpush1.xpose.msra.mxu0 0.0
    %188 = vmatprep.subr.mxu0 0.0
    %189 = vmatpush1.xpose.msra.mxu0 0.0
    %190 = vmatprep.subr.mxu0 0.0
    %191 = vmatpush1.xpose.msra.mxu0 0.0
    %192 = vmatprep.subr.mxu0 0.0
    %193 = vmatpush1.xpose.msra.mxu0 0.0
    %194 = vmatprep.subr.mxu0 0.0
    %195 = vmatpush1.xpose.msra.mxu0 0.0
    %196 = vmatprep.subr.mxu0 0.0
    %197 = vmatpush1.xpose.msra.mxu0 0.0
    %198 = vmatprep.mubr.f32.mxu0 0.0
    %199 = vmatmul.mubr.f32.gmra.mrb[0].mxu0 %v81
    %v200 = vpop.f32.mrb[0].mxu0
    %v201 = vadd.f32 %v77, %v200
    %v202 = vpop.f32.mrb[0].mxu0
    %203 = vmatprep.mubr.f32.mxu0 0.0
    %204 = vmatmul.mubr.f32.gmra.mrb[0].mxu0 %v84
    %v205 = vpop.f32.mrb[0].mxu0
    %v206 = vadd.f32 %v77, %v205
    %v207 = vpop.f32.mrb[0].mxu0
    %208 = vdwg.mxu0
    %209 = vst [vmem:[#allocation8] sm:$0xff] %v201
    %210 = vst [vmem:[#allocation8 + $0x8] sm:$0xff] %v206
    // Predicated region
    $region26: #{tpu_custom_call.1} parent=1 // pred_check
      _
    $region27: #{tpu_custom_call.1} parent=1 // pred_check_branch
      %212 = sbr.rel (0) target = $region29
    $region28: #{tpu_custom_call.1} parent=1 // pred_region
      %s214 = ssub.s32 256, 256
      %215 = vsyncadd [#allocation4], %s214
      %s216 = sshll.u32 [#allocation8], 4
      %s217 = int_to_ptr.vmem [resolvable:$true] %s216
      %222 = dma.vmem_to_hbm [thread:$0]  %s217, 256, %s3, [#allocation4], 128, 128, 8
    $region29: #{tpu_custom_call.1} parent=1 // pred_fallthru
      _
    // Predicated region
    $region30: #{tpu_custom_call.1} parent=1 // pred_check
      _
    $region31: #{tpu_custom_call.1} parent=1 // pred_check_branch
      %224 = sbr.rel (0) target = $region33
    $region32: #{tpu_custom_call.1} parent=1 // pred_region
      %225 = dma.done [#allocation4], 256
    $region33: #{tpu_custom_call.1} parent=1 // pred_fallthru
      _
    %226 = vsyncpa [#allocation3], 1
    %227 = vsyncpa [#allocation6], 1
    %228 = vsyncpa [#allocation4], 1

</llo_original>
